<compile_context>
chip_gen: v5e
topology: v5e:2x2
jax: 0.10.0
libtpu: 0.0.40
codegen_flags: <defaults>
</compile_context>

<pallas_src>
import functools

import jax
import jax.numpy as jnp
from jax.experimental import pallas as pl
from jax.experimental.pallas import tpu as pltpu

LANE = 128
SUBLANE = 8


def _round_up(x, m):
    return (x + m - 1) // m * m


def prediction_head_kernel(x_ref, w1_ref, shift1_ref, w2_ref, b2_ref, o_ref):
    # In-kernel cast of the x tile (rides the VALU slack; avoids a separate
    # wrapper-side HBM pass over x).
    x = x_ref[...].astype(w1_ref.dtype)
    # fc1 (+ folded BN(eval) affine + fc1 bias) -> ReLU.  MXU matmul, f32
    # accumulation; epilogue kept in f32 (v5e has no bf16 VPU path).
    h = jnp.dot(x, w1_ref[...], preferred_element_type=jnp.float32)
    h = jnp.maximum(h + shift1_ref[...], 0.0)
    # Dropout (eval mode) == identity.
    # fc2 (+ bias fused into the epilogue of the second dot).
    out = jnp.dot(h.astype(w2_ref.dtype), w2_ref[...],
                  preferred_element_type=jnp.float32)
    o_ref[...] = (out + b2_ref[...]).astype(o_ref.dtype)


def fold_params(raw, *, use_bf16=True, eps=1e-5):
    """One-time wrapper-side fold of BN(eval) + fc1 bias, plus lane padding of C.

    Returns (folded_arrays_dict, num_classes).  The dict contains ONLY jax
    arrays so it is safe to pass through jax.jit as a pytree argument.
    """
    scale = raw["gamma"] / jnp.sqrt(raw["running_var"] + eps)      # (1, H)
    shift = raw["beta"] - raw["running_mean"] * scale              # (1, H)
    w1 = raw["w1"] * scale          # column-scale in f32; cast to bf16 LAST
    shift1 = raw["b1"] * scale + shift                             # (1, H) f32
    w2, b2 = raw["w2"], raw["b2"]
    C = w2.shape[1]
    Cp = _round_up(C, LANE)                                        # lane-dense out
    w2 = jnp.pad(w2, ((0, 0), (0, Cp - C)))
    b2 = jnp.pad(b2, ((0, 0), (0, Cp - C)))
    mm_dtype = jnp.bfloat16 if use_bf16 else raw["w1"].dtype
    folded = dict(
        w1=w1.astype(mm_dtype),
        shift1=shift1.astype(jnp.float32),
        w2=w2.astype(mm_dtype),
        b2=b2.astype(jnp.float32),
    )
    return folded, C


@functools.partial(jax.jit, static_argnames=("num_classes", "tb", "out_dtype"))
def prediction_head(x, folded, *, num_classes, tb=512, out_dtype=jnp.float32):
    """x: [B, F].  folded: fold_params()[0].  Returns [B, num_classes] out_dtype."""
    w1, shift1, w2, b2 = folded["w1"], folded["shift1"], folded["w2"], folded["b2"]
    F, H = w1.shape
    Cp = w2.shape[1]
    B = x.shape[0]

    # Batch tile: always a multiple of 8 sublanes, at most `tb` rows.  When the
    # whole batch fits under `tb`, split into exactly two grid steps so a v7x
    # megacore shards across both TensorCores; otherwise use tb-sized tiles.
    Bp8 = _round_up(B, SUBLANE)
    tb = max(SUBLANE, _round_up(min(tb, Bp8), SUBLANE))
    if 2 * SUBLANE <= Bp8 <= 2 * tb:
        TB = _round_up(-(-Bp8 // 2), SUBLANE)
    else:
        TB = tb
    grid_n = -(-Bp8 // TB)
    Bp = grid_n * TB
    if Bp != B:
        x = jnp.pad(x, ((0, Bp - B), (0, 0)))   # only wrapper op touching x

    # Footprint-derived VMEM limit: double-buffered x/out tiles + weights
    # (no term for the compiler-managed f32 intermediate h).
    x_item = jnp.dtype(x.dtype).itemsize
    w_item = jnp.dtype(w1.dtype).itemsize
    o_item = jnp.dtype(out_dtype).itemsize
    est = (2 * TB * F * x_item                  # x tile, double-buffered
           + 2 * (F * H + H * Cp) * w_item      # resident weights (2 buffers)
           + 2 * (H + Cp) * 4                   # shift1 / b2 (2 buffers)
           + 2 * TB * Cp * o_item)              # output tile, double-buffered
    vmem_limit = int(min(max(est * 3 // 2 + (2 << 20), 4 << 20), 48 << 20))

    out = pl.pallas_call(
        prediction_head_kernel,
        out_shape=jax.ShapeDtypeStruct((Bp, Cp), out_dtype),
        grid_spec=pltpu.PrefetchScalarGridSpec(
            num_scalar_prefetch=0,
            grid=(grid_n,),
            in_specs=[
                pl.BlockSpec((TB, F), lambda i: (i, 0)),   # x: tiled over batch
                pl.BlockSpec((F, H), lambda i: (0, 0)),    # w1: VMEM-resident
                pl.BlockSpec((1, H), lambda i: (0, 0)),    # folded BN+bias shift
                pl.BlockSpec((H, Cp), lambda i: (0, 0)),   # w2: VMEM-resident
                pl.BlockSpec((1, Cp), lambda i: (0, 0)),   # b2
            ],
            out_specs=pl.BlockSpec((TB, Cp), lambda i: (i, 0)),
        ),
        compiler_params=pltpu.CompilerParams(
            dimension_semantics=("parallel",),
            vmem_limit_bytes=vmem_limit,
        ),
    )(x, w1, shift1, w2, b2)

    return out[:B, :num_classes]


def init_raw_params(key, in_features, num_classes, hidden_dim=256):
    ks = jax.random.split(key, 8)
    w1 = jax.random.normal(ks[0], (in_features, hidden_dim), jnp.float32) * 0.02
    b1 = jax.random.normal(ks[1], (1, hidden_dim), jnp.float32) * 0.01
    w2 = jax.random.normal(ks[2], (hidden_dim, num_classes), jnp.float32) * 0.02
    b2 = jax.random.normal(ks[3], (1, num_classes), jnp.float32) * 0.01
    gamma = 1.0 + 0.1 * jax.random.normal(ks[4], (1, hidden_dim), jnp.float32)
    beta = 0.1 * jax.random.normal(ks[5], (1, hidden_dim), jnp.float32)
    running_mean = 0.05 * jax.random.normal(ks[6], (1, hidden_dim), jnp.float32)
    running_var = jax.random.uniform(ks[7], (1, hidden_dim), jnp.float32, 0.5, 1.5)
    return dict(w1=w1, b1=b1, w2=w2, b2=b2, gamma=gamma, beta=beta,
                running_mean=running_mean, running_var=running_var)


def reference(x, raw, eps=1e-5):
    scale = raw["gamma"] / jnp.sqrt(raw["running_var"] + eps)
    shift = raw["beta"] - raw["running_mean"] * scale
    h = x @ raw["w1"] + raw["b1"]
    h = h * scale + shift
    h = jnp.maximum(h, 0.0)
    return h @ raw["w2"] + raw["b2"]


if __name__ == "__main__":
    key = jax.random.PRNGKey(0)
    k_x, k_x2, k_p = jax.random.split(key, 3)

    B, F, H, C = 8, 32, 256, 10
    x = jax.random.normal(k_x, (B, F), jnp.float32)
    raw = init_raw_params(k_p, in_features=F, num_classes=C, hidden_dim=H)
    ref = reference(x, raw)

    # f32 matmul path (exact check vs. the pure-JAX reference).
    p_f32, n_cls = fold_params(raw, use_bf16=False)
    out = jax.block_until_ready(prediction_head(x, p_f32, num_classes=n_cls))
    assert out.shape == (B, C), out.shape
    assert jnp.allclose(out, ref, atol=1e-4, rtol=1e-4), "f32 mismatch vs reference"

    # Default bf16 MXU-input path (good on v5e / v6e / v7x), looser tolerance.
    p_bf16, n_cls_bf = fold_params(raw)
    out_bf16 = jax.block_until_ready(prediction_head(x, p_bf16, num_classes=n_cls_bf))
    assert out_bf16.shape == (B, C)
    assert jnp.allclose(out_bf16, ref, atol=2e-2, rtol=2e-2), "bf16 mismatch vs reference"

    # bf16 output store (halves per-step HBM writeback), very loose tolerance.
    out_bf16o = jax.block_until_ready(
        prediction_head(x, p_bf16, num_classes=n_cls_bf, out_dtype=jnp.bfloat16))
    assert out_bf16o.shape == (B, C) and out_bf16o.dtype == jnp.bfloat16
    assert jnp.allclose(out_bf16o.astype(jnp.float32), ref, atol=5e-2, rtol=5e-2), \
        "bf16-output mismatch vs reference"

    # Larger batch: exercises minimal batch padding + 2-step parallel grid.
    B2 = 200
    x2 = jax.random.normal(k_x2, (B2, F), jnp.float32)
    ref2 = reference(x2, raw)
    out2 = jax.block_until_ready(prediction_head(x2, p_f32, num_classes=n_cls))
    assert out2.shape == (B2, C)
    assert jnp.allclose(out2, ref2, atol=1e-4, rtol=1e-4), "batched mismatch vs reference"

    print("KERNEL_OK")
</pallas_src>

<mosaic_0001>
module attributes {stable_mosaic.version = 11 : i64} {
  func.func @prediction_head_kernel(%arg0: i32, %arg1: memref<8x32xf32, #tpu.memory_space<vmem>>, %arg2: memref<32x256xf32, #tpu.memory_space<vmem>>, %arg3: memref<1x256xf32, #tpu.memory_space<vmem>>, %arg4: memref<256x128xf32, #tpu.memory_space<vmem>>, %arg5: memref<1x128xf32, #tpu.memory_space<vmem>>, %arg6: memref<8x128xf32, #tpu.memory_space<vmem>>) attributes {dimension_semantics = [#tpu.dimension_semantics<parallel>], iteration_bounds = array<i64: 1>, scalar_prefetch = 0 : i64, scratch_operands = 0 : i64, tpu.core_type = #tpu.core_type<tc>, window_params = [{transform_indices = @transform_0, window_bounds = array<i64: 8, 32>}, {pipeline_mode = #tpu.pipeline_mode<synchronous>, transform_indices = @transform_1, window_bounds = array<i64: 32, 256>}, {pipeline_mode = #tpu.pipeline_mode<synchronous>, transform_indices = @transform_2, window_bounds = array<i64: 1, 256>}, {pipeline_mode = #tpu.pipeline_mode<synchronous>, transform_indices = @transform_3, window_bounds = array<i64: 256, 128>}, {pipeline_mode = #tpu.pipeline_mode<synchronous>, transform_indices = @transform_4, window_bounds = array<i64: 1, 128>}, {transform_indices = @transform_5, window_bounds = array<i64: 8, 128>}]} {
    %c0 = arith.constant 0 : index
    %c0_0 = arith.constant 0 : index
    %0 = vector.load %arg1[%c0, %c0_0] : memref<8x32xf32, #tpu.memory_space<vmem>>, vector<8x32xf32>
    %c0_1 = arith.constant 0 : index
    %c0_2 = arith.constant 0 : index
    %1 = vector.load %arg2[%c0_1, %c0_2] : memref<32x256xf32, #tpu.memory_space<vmem>>, vector<32x256xf32>
    %cst = arith.constant dense<0.000000e+00> : vector<8x256xf32>
    %2 = tpu.matmul %0, %1, %cst {dimension_numbers = #tpu.dot_dimension_numbers<[1], [0], [0], [1], [0, 0, 1, 1], [], []>} : vector<8x32xf32>, vector<32x256xf32>, vector<8x256xf32> -> vector<8x256xf32>
    %c0_3 = arith.constant 0 : index
    %c0_4 = arith.constant 0 : index
    %3 = vector.load %arg3[%c0_3, %c0_4] : memref<1x256xf32, #tpu.memory_space<vmem>>, vector<1x256xf32>
    %4 = vector.broadcast %3 : vector<1x256xf32> to vector<8x256xf32>
    %5 = arith.addf %2, %4 : vector<8x256xf32>
    %cst_5 = arith.constant 0.000000e+00 : f32
    %6 = vector.broadcast %cst_5 : f32 to vector<8x256xf32>
    %7 = arith.maximumf %5, %6 : vector<8x256xf32>
    %c0_6 = arith.constant 0 : index
    %c0_7 = arith.constant 0 : index
    %8 = vector.load %arg4[%c0_6, %c0_7] : memref<256x128xf32, #tpu.memory_space<vmem>>, vector<256x128xf32>
    %cst_8 = arith.constant dense<0.000000e+00> : vector<8x128xf32>
    %9 = tpu.matmul %7, %8, %cst_8 {dimension_numbers = #tpu.dot_dimension_numbers<[1], [0], [0], [1], [0, 0, 1, 1], [], []>} : vector<8x256xf32>, vector<256x128xf32>, vector<8x128xf32> -> vector<8x128xf32>
    %c0_9 = arith.constant 0 : index
    %c0_10 = arith.constant 0 : index
    %10 = vector.load %arg5[%c0_9, %c0_10] : memref<1x128xf32, #tpu.memory_space<vmem>>, vector<1x128xf32>
    %11 = vector.broadcast %10 : vector<1x128xf32> to vector<8x128xf32>
    %12 = arith.addf %9, %11 : vector<8x128xf32>
    %c0_11 = arith.constant 0 : index
    %c0_12 = arith.constant 0 : index
    %13 = vector.load %arg6[%c0_11, %c0_12] : memref<8x128xf32, #tpu.memory_space<vmem>>, vector<8x128xf32>
    tpu.vector_store %arg6[%c0_11, %c0_12], %12 {strides = array<i32>} : memref<8x128xf32, #tpu.memory_space<vmem>>, vector<8x128xf32>,
    return
  }
  func.func @transform_0(%arg0: i32) -> (i32, i32) {
    %c0_i32 = arith.constant 0 : i32
    %c0_i32_0 = arith.constant 0 : i32
    return %arg0, %c0_i32 : i32, i32
  }
  func.func @transform_1(%arg0: i32) -> (i32, i32) {
    %c0_i32 = arith.constant 0 : i32
    %c0_i32_0 = arith.constant 0 : i32
    %c0_i32_1 = arith.constant 0 : i32
    return %c0_i32, %c0_i32_0 : i32, i32
  }
  func.func @transform_2(%arg0: i32) -> (i32, i32) {
    %c0_i32 = arith.constant 0 : i32
    %c0_i32_0 = arith.constant 0 : i32
    %c0_i32_1 = arith.constant 0 : i32
    return %c0_i32, %c0_i32_0 : i32, i32
  }
  func.func @transform_3(%arg0: i32) -> (i32, i32) {
    %c0_i32 = arith.constant 0 : i32
    %c0_i32_0 = arith.constant 0 : i32
    %c0_i32_1 = arith.constant 0 : i32
    return %c0_i32, %c0_i32_0 : i32, i32
  }
  func.func @transform_4(%arg0: i32) -> (i32, i32) {
    %c0_i32 = arith.constant 0 : i32
    %c0_i32_0 = arith.constant 0 : i32
    %c0_i32_1 = arith.constant 0 : i32
    return %c0_i32, %c0_i32_0 : i32, i32
  }
  func.func @transform_5(%arg0: i32) -> (i32, i32) {
    %c0_i32 = arith.constant 0 : i32
    %c0_i32_0 = arith.constant 0 : i32
    return %arg0, %c0_i32 : i32, i32
  }
}

</mosaic_0001>

<llo_original>
// kernel: prediction_head.1
$region0: #{prediction_head.1}
  #allocation0 [shape = 'u32[]', space=smem, size = 0x4, offset = 0x4, fixed_abs, tag = 'smem constant byte address 0x4 - core index']
  #allocation1 [shape = 'u32[72,128]{1,0:T(1,128)}', space=vmem, size = 0x9000, scoped, tag = 'internal scratch']
  %s0 = inlined_call_operand.hbm [shape: f32[8,32], index: 0, kind: input, shape index: {}]
  %s1 = inlined_call_operand.hbm [shape: f32[32,256], index: 1, kind: input, shape index: {}]
  %s2 = inlined_call_operand.hbm [shape: f32[1,256], index: 2, kind: input, shape index: {}]
  %s3 = inlined_call_operand.hbm [shape: f32[256,128], index: 3, kind: input, shape index: {}]
  %s4 = inlined_call_operand.hbm [shape: f32[1,128], index: 4, kind: input, shape index: {}]
  %s5 = inlined_call_operand.hbm [shape: f32[8,128], index: 5, kind: output, shape index: {}]
  %s6 = sld [smem:[#allocation0]]
  $region50: #{prediction_head.1} parent=0
    _
  %s8 = ssub.s32 1, %s6
  %s9 = scalar_select 0, %s8, %s6
  $region1: #{prediction_head.1} parent=0
    #allocation2 [shape = 'u8[4096]{0}', space=vmem, size = 0x1000, scoped, tag = 'input window, operand 0, single buffered']
    #allocation3 [shape = 's32[1]{0}', space=sflag, size = 0x4, scoped, tag = 'scoped memory for prediction_head.1']
    #allocation4 [shape = 's32[1]{0}', space=sflag, size = 0x4, scoped, tag = 'scoped memory for prediction_head.1']
    #allocation5 [shape = 'u8[32768]{0}', space=vmem, size = 0x8000, scoped, tag = 'input window, operand 1, single buffered']
    #allocation6 [shape = 's32[1]{0}', space=sflag, size = 0x4, scoped, tag = 'scoped memory for prediction_head.1']
    #allocation7 [shape = 'u8[1024]{0}', space=vmem, size = 0x400, scoped, tag = 'input window, operand 2, single buffered']
    #allocation8 [shape = 'u8[131072]{0}', space=vmem, size = 0x20000, scoped, tag = 'input window, operand 3, single buffered']
    #allocation9 [shape = 's32[1]{0}', space=sflag, size = 0x4, scoped, tag = 'scoped memory for prediction_head.1']
    #allocation10 [shape = 'u8[512]{0}', space=vmem, size = 0x400, scoped, tag = 'input window, operand 4, single buffered']
    #allocation11 [shape = 'u8[4096]{0}', space=vmem, size = 0x1000, scoped, tag = 'output window, operand 0, single buffered']
    %10 = vsyncpa [#allocation3], 0
    %11 = vsyncpa [#allocation6], 0
    %12 = vsyncpa [#allocation9], 0
    %13 = vsyncpa [#allocation4], 0
    // Predicated region
    $region2: #{prediction_head.1} parent=1 // pred_check
      _
    $region3: #{prediction_head.1} parent=1 // pred_check_branch
      %15 = sbr.rel (0) target = $region5
    $region4: #{prediction_head.1} parent=1 // pred_region
      %17 = vsyncadd [#allocation3], 0
      %s19 = sshll.u32 %s0, 4
      %s20 = int_to_ptr.hbm [resolvable:$true] %s19
      %s21 = sshll.u32 [#allocation2], 4
      %s22 = int_to_ptr.vmem [resolvable:$true] %s21
      %24 = dma.hbm_to_vmem [thread:$0]  %s20, 128, %s22, [#allocation3]
    $region5: #{prediction_head.1} parent=1 // pred_fallthru
      _
    // Predicated region
    $region6: #{prediction_head.1} parent=1 // pred_check
      _
    $region7: #{prediction_head.1} parent=1 // pred_check_branch
      %26 = sbr.rel (0) target = $region9
    $region8: #{prediction_head.1} parent=1 // pred_region
      %28 = vsyncadd [#allocation6], 0
      %s29 = sshll.u32 %s1, 4
      %s30 = int_to_ptr.hbm [resolvable:$true] %s29
      %s31 = sshll.u32 [#allocation5], 4
      %s32 = int_to_ptr.vmem [resolvable:$true] %s31
      %37 = dma.hbm_to_vmem [thread:$0]  %s30, 1024, %s32, [#allocation6], 256, 256, 16
    $region9: #{prediction_head.1} parent=1 // pred_fallthru
      _
    // Predicated region
    $region10: #{prediction_head.1} parent=1 // pred_check
      _
    $region11: #{prediction_head.1} parent=1 // pred_check_branch
      %39 = sbr.rel (0) target = $region13
    $region12: #{prediction_head.1} parent=1 // pred_region
      %41 = vsyncadd [#allocation6], 0
      %s43 = sshll.u32 %s2, 4
      %s44 = int_to_ptr.hbm [resolvable:$true] %s43
      %s45 = sshll.u32 [#allocation7], 4
      %s46 = int_to_ptr.vmem [resolvable:$true] %s45
      %48 = dma.hbm_to_vmem [thread:$0]  %s44, 32, %s46, [#allocation6]
    $region13: #{prediction_head.1} parent=1 // pred_fallthru
      _
    // Predicated region
    $region14: #{prediction_head.1} parent=1 // pred_check
      _
    $region15: #{prediction_head.1} parent=1 // pred_check_branch
      %50 = sbr.rel (0) target = $region17
    $region16: #{prediction_head.1} parent=1 // pred_region
      %52 = vsyncadd [#allocation9], 0
      %s53 = sshll.u32 %s3, 4
      %s54 = int_to_ptr.hbm [resolvable:$true] %s53
      %s55 = sshll.u32 [#allocation8], 4
      %s56 = int_to_ptr.vmem [resolvable:$true] %s55
      %61 = dma.hbm_to_vmem [thread:$0]  %s54, 4096, %s56, [#allocation9], 128, 128, 8
    $region17: #{prediction_head.1} parent=1 // pred_fallthru
      _
    // Predicated region
    $region18: #{prediction_head.1} parent=1 // pred_check
      _
    $region19: #{prediction_head.1} parent=1 // pred_check_branch
      %63 = sbr.rel (0) target = $region21
    $region20: #{prediction_head.1} parent=1 // pred_region
      %65 = vsyncadd [#allocation9], 0
      %s67 = sshll.u32 %s4, 4
      %s68 = int_to_ptr.hbm [resolvable:$true] %s67
      %s69 = sshll.u32 [#allocation10], 4
      %s70 = int_to_ptr.vmem [resolvable:$true] %s69
      %72 = dma.hbm_to_vmem [thread:$0]  %s68, 16, %s70, [#allocation9]
    $region21: #{prediction_head.1} parent=1 // pred_fallthru
      _
    // Predicated region
    $region22: #{prediction_head.1} parent=1 // pred_check
      _
    $region23: #{prediction_head.1} parent=1 // pred_check_branch
      %74 = sbr.rel (0) target = $region25
    $region24: #{prediction_head.1} parent=1 // pred_region
      %76 = dma.done [#allocation3], 128
    $region25: #{prediction_head.1} parent=1 // pred_fallthru
      _
    // Predicated region
    $region26: #{prediction_head.1} parent=1 // pred_check
      _
    $region27: #{prediction_head.1} parent=1 // pred_check_branch
      %78 = sbr.rel (0) target = $region29
    $region28: #{prediction_head.1} parent=1 // pred_region
      %80 = dma.done [#allocation6], 1024
    $region29: #{prediction_head.1} parent=1 // pred_fallthru
      _
    // Predicated region
    $region30: #{prediction_head.1} parent=1 // pred_check
      _
    $region31: #{prediction_head.1} parent=1 // pred_check_branch
      %82 = sbr.rel (0) target = $region33
    $region32: #{prediction_head.1} parent=1 // pred_region
      %84 = dma.done [#allocation6], 32
    $region33: #{prediction_head.1} parent=1 // pred_fallthru
      _
    // Predicated region
    $region34: #{prediction_head.1} parent=1 // pred_check
      _
    $region35: #{prediction_head.1} parent=1 // pred_check_branch
      %86 = sbr.rel (0) target = $region37
    $region36: #{prediction_head.1} parent=1 // pred_region
      %88 = dma.done [#allocation9], 4096
    $region37: #{prediction_head.1} parent=1 // pred_fallthru
      _
    // Predicated region
    $region38: #{prediction_head.1} parent=1 // pred_check
      _
    $region39: #{prediction_head.1} parent=1 // pred_check_branch
      %90 = sbr.rel (0) target = $region41
    $region40: #{prediction_head.1} parent=1 // pred_region
      %92 = dma.done [#allocation9], 16
    $region41: #{prediction_head.1} parent=1 // pred_fallthru
      _
    %v93 = vld [vmem:[#allocation2] sm:$0xff]
    %v94 = vld [vmem:[#allocation5] sm:$0xff]
    %v95 = vld [vmem:[#allocation5 + $0x8] sm:$0xff]
    %v96 = vld [vmem:[#allocation5 + $0x10] sm:$0xff]
    %v97 = vld [vmem:[#allocation5 + $0x18] sm:$0xff]
    %v98 = vld [vmem:[#allocation5 + $0x20] sm:$0xff]
    %v99 = vld [vmem:[#allocation5 + $0x28] sm:$0xff]
    %v100 = vld [vmem:[#allocation5 + $0x30] sm:$0xff]
    %v101 = vld [vmem:[#allocation5 + $0x38] sm:$0xff]
    %v102 = vld [vmem:[#allocation7] sm:$0x3]
    %v104 = vperm.slane %v102, 0
    %v105 = vperm.slane %v102, 1
    %vm108 = vcmask 261120
    %v110 = vsel %vm108, %v93, 0
    %112 = vmatpush.msra.mxu0 0.0
    %113 = vmatpush.msra.mxu0 0.0
    %114 = vmatpush.msra.mxu0 0.0
    %115 = vmatpush.msra.mxu0 0.0
    %116 = vmatpush.msra.mxu0 0.0
    %117 = vmatpush.msra.mxu0 0.0
    %118 = vmatpush.msra.mxu0 0.0
    %119 = vmatpush.msra.mxu0 0.0
    %120 = vmatpush.msra.mxu0 0.0
    %121 = vmatpush.msra.mxu0 0.0
    %122 = vmatpush.msra.mxu0 0.0
    %123 = vmatpush.msra.mxu0 0.0
    %124 = vmatpush.msra.mxu0 %v100
    %125 = vmatpush.msra.mxu0 %v98
    %126 = vmatpush.msra.mxu0 %v96
    %127 = vmatpush.msra.mxu0 %v94
    %128 = vmatmul.f32.gmra.mxu0 %v110
    %v129 = vpop.f32.mrf.mxu0
    %v130 = vadd.f32 %v104, %v129
    %131 = vdwg.mxu0
    %132 = vmatpush.msra.mxu0 0.0
    %133 = vmatpush.msra.mxu0 0.0
    %134 = vmatpush.msra.mxu0 0.0
    %135 = vmatpush.msra.mxu0 0.0
    %136 = vmatpush.msra.mxu0 0.0
    %137 = vmatpush.msra.mxu0 0.0
    %138 = vmatpush.msra.mxu0 0.0
    %139 = vmatpush.msra.mxu0 0.0
    %140 = vmatpush.msra.mxu0 0.0
    %141 = vmatpush.msra.mxu0 0.0
    %142 = vmatpush.msra.mxu0 0.0
    %143 = vmatpush.msra.mxu0 0.0
    %144 = vmatpush.msra.mxu0 %v101
    %145 = vmatpush.msra.mxu0 %v99
    %146 = vmatpush.msra.mxu0 %v97
    %147 = vmatpush.msra.mxu0 %v95
    %148 = vmatmul.f32.gmra.mxu0 %v110
    %v149 = vpop.f32.mrf.mxu0
    %v150 = vadd.f32 %v105, %v149
    %151 = vdwg.mxu0
    %v152 = vmax.f32 %v130, 0.0
    %v153 = vmax.f32 %v150, 0.0
    %v154 = vld [vmem:[#allocation8] sm:$0xff]
    %v155 = vld [vmem:[#allocation8 + $0x8] sm:$0xff]
    %v156 = vld [vmem:[#allocation8 + $0x10] sm:$0xff]
    %v157 = vld [vmem:[#allocation8 + $0x18] sm:$0xff]
    %v158 = vld [vmem:[#allocation8 + $0x20] sm:$0xff]
    %v159 = vld [vmem:[#allocation8 + $0x28] sm:$0xff]
    %v160 = vld [vmem:[#allocation8 + $0x30] sm:$0xff]
    %v161 = vld [vmem:[#allocation8 + $0x38] sm:$0xff]
    %v162 = vld [vmem:[#allocation8 + $0x40] sm:$0xff]
    %v163 = vld [vmem:[#allocation8 + $0x48] sm:$0xff]
    %v164 = vld [vmem:[#allocation8 + $0x50] sm:$0xff]
    %v165 = vld [vmem:[#allocation8 + $0x58] sm:$0xff]
    %v166 = vld [vmem:[#allocation8 + $0x60] sm:$0xff]
    %v167 = vld [vmem:[#allocation8 + $0x68] sm:$0xff]
    %v168 = vld [vmem:[#allocation8 + $0x70] sm:$0xff]
    %v169 = vld [vmem:[#allocation8 + $0x78] sm:$0xff]
    %v170 = vld [vmem:[#allocation8 + $0x80] sm:$0xff]
    %v171 = vld [vmem:[#allocation8 + $0x88] sm:$0xff]
    %v172 = vld [vmem:[#allocation8 + $0x90] sm:$0xff]
    %v173 = vld [vmem:[#allocation8 + $0x98] sm:$0xff]
    %v174 = vld [vmem:[#allocation8 + $0xa0] sm:$0xff]
    %v175 = vld [vmem:[#allocation8 + $0xa8] sm:$0xff]
    %v176 = vld [vmem:[#allocation8 + $0xb0] sm:$0xff]
    %v177 = vld [vmem:[#allocation8 + $0xb8] sm:$0xff]
    %v178 = vld [vmem:[#allocation8 + $0xc0] sm:$0xff]
    %v179 = vld [vmem:[#allocation8 + $0xc8] sm:$0xff]
    %v180 = vld [vmem:[#allocation8 + $0xd0] sm:$0xff]
    %v181 = vld [vmem:[#allocation8 + $0xd8] sm:$0xff]
    %v182 = vld [vmem:[#allocation8 + $0xe0] sm:$0xff]
    %v183 = vld [vmem:[#allocation8 + $0xe8] sm:$0xff]
    %v184 = vld [vmem:[#allocation8 + $0xf0] sm:$0xff]
    %v185 = vld [vmem:[#allocation8 + $0xf8] sm:$0xff]
    %v186 = vld [vmem:[#allocation10] sm:$0x1]
    %v188 = vperm.slane %v186, 0
    %190 = vmatpush.msra.mxu0 %v169
    %191 = vmatpush.msra.mxu0 %v168
    %192 = vmatpush.msra.mxu0 %v167
    %193 = vmatpush.msra.mxu0 %v166
    %194 = vmatpush.msra.mxu0 %v165
    %195 = vmatpush.msra.mxu0 %v164
    %196 = vmatpush.msra.mxu0 %v163
    %197 = vmatpush.msra.mxu0 %v162
    %198 = vmatpush.msra.mxu0 %v161
    %199 = vmatpush.msra.mxu0 %v160
    %200 = vmatpush.msra.mxu0 %v159
    %201 = vmatpush.msra.mxu0 %v158
    %202 = vmatpush.msra.mxu0 %v157
    %203 = vmatpush.msra.mxu0 %v156
    %204 = vmatpush.msra.mxu0 %v155
    %205 = vmatpush.msra.mxu0 %v154
    %206 = vmatmul.f32.gmra.mxu0 %v152
    %v207 = vpop.f32.mrf.mxu0
    %v208 = vadd.f32 %v188, %v207
    %209 = vdwg.mxu0
    %210 = vmatpush.msra.mxu0 %v185
    %211 = vmatpush.msra.mxu0 %v184
    %212 = vmatpush.msra.mxu0 %v183
    %213 = vmatpush.msra.mxu0 %v182
    %214 = vmatpush.msra.mxu0 %v181
    %215 = vmatpush.msra.mxu0 %v180
    %216 = vmatpush.msra.mxu0 %v179
    %217 = vmatpush.msra.mxu0 %v178
    %218 = vmatpush.msra.mxu0 %v177
    %219 = vmatpush.msra.mxu0 %v176
    %220 = vmatpush.msra.mxu0 %v175
    %221 = vmatpush.msra.mxu0 %v174
    %222 = vmatpush.msra.mxu0 %v173
    %223 = vmatpush.msra.mxu0 %v172
    %224 = vmatpush.msra.mxu0 %v171
    %225 = vmatpush.msra.mxu0 %v170
    %226 = vmatmul.f32.gmra.mxu0 %v153
    %v227 = vpop.f32.mrf.mxu0
    %v228 = vadd.f32 %v208, %v227
    %229 = vdwg.mxu0
    %230 = vst [vmem:[#allocation11] sm:$0xff] %v228
    // Predicated region
    $region42: #{prediction_head.1} parent=1 // pred_check
      _
    $region43: #{prediction_head.1} parent=1 // pred_check_branch
      %232 = sbr.rel (0) target = $region45
    $region44: #{prediction_head.1} parent=1 // pred_region
      %234 = vsyncadd [#allocation4], 0
      %s236 = sshll.u32 [#allocation11], 4
      %s237 = int_to_ptr.vmem [resolvable:$true] %s236
      %s238 = sshll.u32 %s5, 4
      %s239 = int_to_ptr.hbm [resolvable:$true] %s238
      %241 = dma.vmem_to_hbm [thread:$0]  %s237, 128, %s239, [#allocation4]
    $region45: #{prediction_head.1} parent=1 // pred_fallthru
      _
    // Predicated region
    $region46: #{prediction_head.1} parent=1 // pred_check
      _
    $region47: #{prediction_head.1} parent=1 // pred_check_branch
      %243 = sbr.rel (0) target = $region49
    $region48: #{prediction_head.1} parent=1 // pred_region
      %245 = dma.done [#allocation4], 128
    $region49: #{prediction_head.1} parent=1 // pred_fallthru
      _
    %246 = vsyncpa [#allocation3], 1
    %247 = vsyncpa [#allocation6], 1
    %248 = vsyncpa [#allocation9], 1
    %249 = vsyncpa [#allocation4], 1

</llo_original>
